<compile_context>
chip_gen: v7x
topology: tpu7x:2x2x1
jax: 0.10.0
libtpu: 0.0.40
codegen_flags: <defaults>
</compile_context>

<pallas_src>
import functools

import numpy as np

import jax
import jax.numpy as jnp
from jax.experimental import pallas as pl
from jax.experimental.pallas import tpu as pltpu

_LANE = 128
_SUBLANE = 8


def _ceil_to(v, m):
    return -(-v // m) * m


def _vmem_budgets():
    """Per-generation scoped-VMEM limit and block-sizing budget."""
    phys = 64 * 1024 * 1024  # conservative default (v7x-sized)
    try:
        info = pltpu.get_tpu_info()
        cap = getattr(info, "vmem_capacity_bytes", None)
        if cap:
            phys = int(cap)
    except Exception:
        pass
    limit = min((phys * 3) // 4, 96 * 1024 * 1024)   # 96 MiB on 128 MiB parts, 48 MiB on v7x
    budget = (limit * 2) // 3                        # headroom for Mosaic scratch / temps
    return phys, limit, budget


@functools.lru_cache(maxsize=64)
def _yz_gather_matrix(Y, Z, Yo, Zo, dtype_name):
    """One-hot (Y*Z, Yo*Zo) nearest-gather matrix, cached across calls."""
    src_y = (np.arange(Yo) * Y) // Yo
    src_z = (np.arange(Zo) * Z) // Zo
    src = (src_y[:, None] * Z + src_z[None, :]).reshape(-1)          # (Yo*Zo,)
    e = np.arange(Y * Z)[:, None] == src[None, :]                    # bool (Y*Z, Yo*Zo)
    return jnp.asarray(e, dtype=dtype_name)


def _nearest_unpool_kernel(x_ref, e_ref, o_ref, *, X, Xo, YZ, YoZo):
    # x_ref: (tn, X*Y*Z)   e_ref: (Y*Z, Yo*Zo)   o_ref: (tn, Xo*Yo*Zo)
    e = e_ref[...]
    for sx in range(X):                                   # static unroll over input X
        slab = x_ref[:, sx * YZ:(sx + 1) * YZ]             # (tn, Y*Z) static slice
        if slab.dtype != e.dtype:
            slab = slab.astype(e.dtype)
        # One small MXU push gathers the whole (Yo, Zo) lane pattern for this x-slab.
        # f32 accumulation is exact: every E column contains exactly one 1.0.
        yz = jnp.dot(slab, e, preferred_element_type=jnp.float32).astype(o_ref.dtype)
        # Output xo positions with floor(xo * X / Xo) == sx (computed at trace time).
        xo_lo = -(-(sx * Xo) // X)
        xo_hi = -(-((sx + 1) * Xo) // X)
        for xo in range(xo_lo, xo_hi):
            o_ref[:, xo * YoZo:(xo + 1) * YoZo] = yz


def spatial_pooling_avg_unpool(x, indices_spa=None, indices_sph=None,
                               kernel_size_spa=(2, 2, 2), stride=None):
    """Pallas equivalent of SpatialPoolingAvgUnpool.forward (indices are unused)."""
    del indices_spa, indices_sph  # unused by the reference forward pass
    if stride is None:
        stride = kernel_size_spa

    redim = (x.ndim == 6)
    if redim:
        B, Fin, V, X, Y, Z = x.shape
        N = B * Fin * V
    else:
        B, Fin, X, Y, Z = x.shape
        N = B * Fin

    Xo = (X - 1) * stride[0] + kernel_size_spa[0]
    Yo = (Y - 1) * stride[1] + kernel_size_spa[1]
    Zo = (Z - 1) * stride[2] + kernel_size_spa[2]
    YZ, YoZo = Y * Z, Yo * Zo
    Sin, Sout = X * YZ, Xo * YoZo

    x_dtype = jnp.dtype(x.dtype)
    # Matmul dtype: keep bf16 / f32 inputs in their own dtype (E built to match); everything
    # else (ints, f16, bool) goes through f32.
    if x_dtype in (jnp.dtype(jnp.bfloat16), jnp.dtype(jnp.float32)):
        mm_dtype = x_dtype
    else:
        # TODO(synk): integer inputs are exact only for |x| < 2^24 (f32 gather path).
        mm_dtype = jnp.dtype(jnp.float32)
    in_isz = x_dtype.itemsize
    mm_isz = mm_dtype.itemsize

    e_mat = _yz_gather_matrix(Y, Z, Yo, Zo, mm_dtype.name)

    # ---- VMEM sizing (per-generation budgets, accumulators & cast copies included) ----
    phys, vmem_limit, budget = _vmem_budgets()
    per_row = (2 * _ceil_to(Sin, _LANE) * in_isz            # double-buffered input block
               + 2 * _ceil_to(Sout, _LANE) * in_isz         # double-buffered output block
               + 2 * _ceil_to(YoZo, _LANE) * 4)             # f32 dot result + cast copy
    if mm_dtype != x_dtype:
        per_row += _ceil_to(Sin, _LANE) * 4                 # in-kernel compute-dtype copy
    fixed = 2 * _ceil_to(YZ, _SUBLANE) * _ceil_to(YoZo, _LANE) * mm_isz   # resident E

    min_rows = N if N <= _SUBLANE else _SUBLANE
    min_bytes = fixed + min_rows * per_row
    if min_bytes > budget:
        # TODO(synk): for volumes whose minimal blocks exceed VMEM, chunk the Xo axis.
        budget = min_bytes
        vmem_limit = max(vmem_limit, min(budget + (16 << 20), (phys * 9) // 10))

    tn = max(_SUBLANE, ((budget - fixed) // per_row) // _SUBLANE * _SUBLANE)
    tn = min(tn, 1024)                                      # ~1k-row blocks ≈ HBM roofline
    if N <= _SUBLANE:
        tn = N
    else:
        tn = min(tn, (N // _SUBLANE) * _SUBLANE)
    nrb = pl.cdiv(N, tn)

    xf = x.reshape(N, Sin)

    cost = pl.CostEstimate(
        flops=2 * N * Sin * YoZo,
        transcendentals=0,
        bytes_accessed=N * (Sin + Sout) * in_isz + YZ * YoZo * mm_isz)

    out = pl.pallas_call(
        functools.partial(_nearest_unpool_kernel, X=X, Xo=Xo, YZ=YZ, YoZo=YoZo),
        out_shape=jax.ShapeDtypeStruct((N, Sout), x.dtype),
        grid=(nrb,),
        in_specs=[
            pl.BlockSpec((tn, Sin), lambda i: (i, 0)),
            # Constant block index: E is DMA'd once and stays VMEM-resident.
            pl.BlockSpec((YZ, YoZo), lambda i: (0, 0)),
        ],
        out_specs=pl.BlockSpec((tn, Sout), lambda i: (i, 0)),
        compiler_params=pltpu.CompilerParams(
            dimension_semantics=("parallel",),
            vmem_limit_bytes=vmem_limit),
        cost_estimate=cost,
    )(xf, e_mat)

    if redim:
        return out.reshape(B, Fin, V, Xo, Yo, Zo)
    return out.reshape(B, Fin, Xo, Yo, Zo)


if __name__ == "__main__":
    key = jax.random.PRNGKey(0)

    # 6-D case: [B, Fin, V, X, Y, Z]
    B, Fin, V, X, Y, Z = 2, 4, 4, 4, 4, 4
    x6 = jax.random.normal(key, (B, Fin, V, X, Y, Z), dtype=jnp.float32)
    indices_spa = jnp.zeros((B, Fin, V, X, Y, Z), dtype=jnp.int32)  # unused by forward
    indices_sph = jnp.zeros((B, Fin, V), dtype=jnp.int32)           # unused by forward

    out6 = jax.block_until_ready(
        spatial_pooling_avg_unpool(x6, indices_spa, indices_sph))
    ref6 = jnp.repeat(jnp.repeat(jnp.repeat(x6, 2, axis=3), 2, axis=4), 2, axis=5)
    assert out6.shape == (B, Fin, V, 2 * X, 2 * Y, 2 * Z), out6.shape
    assert jnp.allclose(out6, ref6, atol=1e-6), "6D mismatch vs nearest-upsample reference"

    # 5-D case with non-uniform spatial sizes: [B, Fin, X, Y, Z]
    x5 = jax.random.normal(jax.random.PRNGKey(1), (2, 4, 3, 5, 6), dtype=jnp.float32)
    out5 = jax.block_until_ready(spatial_pooling_avg_unpool(x5))
    ref5 = jnp.repeat(jnp.repeat(jnp.repeat(x5, 2, axis=2), 2, axis=3), 2, axis=4)
    assert out5.shape == (2, 4, 6, 10, 12), out5.shape
    assert jnp.allclose(out5, ref5, atol=1e-6), "5D mismatch vs nearest-upsample reference"

    # bf16 path: E and matmul in bf16, exact (pure copy semantics).
    x_bf = x6.astype(jnp.bfloat16)
    out_bf = jax.block_until_ready(spatial_pooling_avg_unpool(x_bf))
    assert out_bf.dtype == jnp.bfloat16
    assert jnp.array_equal(out_bf, ref6.astype(jnp.bfloat16)), "bf16 mismatch"

    print("KERNEL_OK")
</pallas_src>

<mosaic_0001>
module attributes {stable_mosaic.version = 11 : i64} {
  func.func @_nearest_unpool_kernel(%arg0: i32, %arg1: memref<32x64xf32, #tpu.memory_space<vmem>>, %arg2: memref<16x64xf32, #tpu.memory_space<vmem>>, %arg3: memref<32x512xf32, #tpu.memory_space<vmem>>) attributes {dimension_semantics = [#tpu.dimension_semantics<parallel>], iteration_bounds = array<i64: 1>, scalar_prefetch = 0 : i64, scratch_operands = 0 : i64, tpu.core_type = #tpu.core_type<tc>, window_params = [{transform_indices = @transform_0, window_bounds = array<i64: 32, 64>}, {pipeline_mode = #tpu.pipeline_mode<synchronous>, transform_indices = @transform_1, window_bounds = array<i64: 16, 64>}, {transform_indices = @transform_2, window_bounds = array<i64: 32, 512>}]} {
    %c0 = arith.constant 0 : index
    %c0_0 = arith.constant 0 : index
    %0 = vector.load %arg2[%c0, %c0_0] : memref<16x64xf32, #tpu.memory_space<vmem>>, vector<16x64xf32>
    %c0_1 = arith.constant 0 : index
    %c0_2 = arith.constant 0 : index
    %1 = vector.load %arg1[%c0_1, %c0_2] : memref<32x64xf32, #tpu.memory_space<vmem>>, vector<32x16xf32>
    %cst = arith.constant dense<0.000000e+00> : vector<32x64xf32>
    %2 = tpu.matmul %1, %0, %cst {dimension_numbers = #tpu.dot_dimension_numbers<[1], [0], [0], [1], [0, 0, 1, 1], [], []>} : vector<32x16xf32>, vector<16x64xf32>, vector<32x64xf32> -> vector<32x64xf32>
    %c0_3 = arith.constant 0 : index
    %c0_4 = arith.constant 0 : index
    %3 = vector.load %arg3[%c0_3, %c0_4] : memref<32x512xf32, #tpu.memory_space<vmem>>, vector<32x64xf32>
    tpu.vector_store %arg3[%c0_3, %c0_4], %2 {strides = array<i32>} : memref<32x512xf32, #tpu.memory_space<vmem>>, vector<32x64xf32>,
    %c0_5 = arith.constant 0 : index
    %c64 = arith.constant 64 : index
    %4 = vector.load %arg3[%c0_5, %c64] : memref<32x512xf32, #tpu.memory_space<vmem>>, vector<32x64xf32>
    tpu.vector_store %arg3[%c0_5, %c64], %2 {strides = array<i32>} : memref<32x512xf32, #tpu.memory_space<vmem>>, vector<32x64xf32>,
    %c0_6 = arith.constant 0 : index
    %c16 = arith.constant 16 : index
    %5 = vector.load %arg1[%c0_6, %c16] : memref<32x64xf32, #tpu.memory_space<vmem>>, vector<32x16xf32>
    %cst_7 = arith.constant dense<0.000000e+00> : vector<32x64xf32>
    %6 = tpu.matmul %5, %0, %cst_7 {dimension_numbers = #tpu.dot_dimension_numbers<[1], [0], [0], [1], [0, 0, 1, 1], [], []>} : vector<32x16xf32>, vector<16x64xf32>, vector<32x64xf32> -> vector<32x64xf32>
    %c0_8 = arith.constant 0 : index
    %c128 = arith.constant 128 : index
    %7 = vector.load %arg3[%c0_8, %c128] : memref<32x512xf32, #tpu.memory_space<vmem>>, vector<32x64xf32>
    tpu.vector_store %arg3[%c0_8, %c128], %6 {strides = array<i32>} : memref<32x512xf32, #tpu.memory_space<vmem>>, vector<32x64xf32>,
    %c0_9 = arith.constant 0 : index
    %c192 = arith.constant 192 : index
    %8 = vector.load %arg3[%c0_9, %c192] : memref<32x512xf32, #tpu.memory_space<vmem>>, vector<32x64xf32>
    tpu.vector_store %arg3[%c0_9, %c192], %6 {strides = array<i32>} : memref<32x512xf32, #tpu.memory_space<vmem>>, vector<32x64xf32>,
    %c0_10 = arith.constant 0 : index
    %c32 = arith.constant 32 : index
    %9 = vector.load %arg1[%c0_10, %c32] : memref<32x64xf32, #tpu.memory_space<vmem>>, vector<32x16xf32>
    %cst_11 = arith.constant dense<0.000000e+00> : vector<32x64xf32>
    %10 = tpu.matmul %9, %0, %cst_11 {dimension_numbers = #tpu.dot_dimension_numbers<[1], [0], [0], [1], [0, 0, 1, 1], [], []>} : vector<32x16xf32>, vector<16x64xf32>, vector<32x64xf32> -> vector<32x64xf32>
    %c0_12 = arith.constant 0 : index
    %c256 = arith.constant 256 : index
    %11 = vector.load %arg3[%c0_12, %c256] : memref<32x512xf32, #tpu.memory_space<vmem>>, vector<32x64xf32>
    tpu.vector_store %arg3[%c0_12, %c256], %10 {strides = array<i32>} : memref<32x512xf32, #tpu.memory_space<vmem>>, vector<32x64xf32>,
    %c0_13 = arith.constant 0 : index
    %c320 = arith.constant 320 : index
    %12 = vector.load %arg3[%c0_13, %c320] : memref<32x512xf32, #tpu.memory_space<vmem>>, vector<32x64xf32>
    tpu.vector_store %arg3[%c0_13, %c320], %10 {strides = array<i32>} : memref<32x512xf32, #tpu.memory_space<vmem>>, vector<32x64xf32>,
    %c0_14 = arith.constant 0 : index
    %c48 = arith.constant 48 : index
    %13 = vector.load %arg1[%c0_14, %c48] : memref<32x64xf32, #tpu.memory_space<vmem>>, vector<32x16xf32>
    %cst_15 = arith.constant dense<0.000000e+00> : vector<32x64xf32>
    %14 = tpu.matmul %13, %0, %cst_15 {dimension_numbers = #tpu.dot_dimension_numbers<[1], [0], [0], [1], [0, 0, 1, 1], [], []>} : vector<32x16xf32>, vector<16x64xf32>, vector<32x64xf32> -> vector<32x64xf32>
    %c0_16 = arith.constant 0 : index
    %c384 = arith.constant 384 : index
    %15 = vector.load %arg3[%c0_16, %c384] : memref<32x512xf32, #tpu.memory_space<vmem>>, vector<32x64xf32>
    tpu.vector_store %arg3[%c0_16, %c384], %14 {strides = array<i32>} : memref<32x512xf32, #tpu.memory_space<vmem>>, vector<32x64xf32>,
    %c0_17 = arith.constant 0 : index
    %c448 = arith.constant 448 : index
    %16 = vector.load %arg3[%c0_17, %c448] : memref<32x512xf32, #tpu.memory_space<vmem>>, vector<32x64xf32>
    tpu.vector_store %arg3[%c0_17, %c448], %14 {strides = array<i32>} : memref<32x512xf32, #tpu.memory_space<vmem>>, vector<32x64xf32>,
    return
  }
  func.func @transform_0(%arg0: i32) -> (i32, i32) {
    %c0_i32 = arith.constant 0 : i32
    %c0_i32_0 = arith.constant 0 : i32
    return %arg0, %c0_i32 : i32, i32
  }
  func.func @transform_1(%arg0: i32) -> (i32, i32) {
    %c0_i32 = arith.constant 0 : i32
    %c0_i32_0 = arith.constant 0 : i32
    %c0_i32_1 = arith.constant 0 : i32
    return %c0_i32, %c0_i32_0 : i32, i32
  }
  func.func @transform_2(%arg0: i32) -> (i32, i32) {
    %c0_i32 = arith.constant 0 : i32
    %c0_i32_0 = arith.constant 0 : i32
    return %arg0, %c0_i32 : i32, i32
  }
}

</mosaic_0001>

<llo_original>
// kernel: tpu_custom_call.1
$region0: #{tpu_custom_call.1}
  #allocation0 [shape = 'u32[]', space=smem, size = 0x4, offset = 0x4, fixed_abs, tag = 'smem constant byte address 0x4 - core index']
  #allocation1 [shape = 'u32[144,128]{1,0:T(1,128)}', space=vmem, size = 0x12000, scoped, tag = 'internal scratch']
  %s0 = inlined_call_operand.hbm [shape: f32[32,64], index: 0, kind: input, shape index: {}]
  %s1 = inlined_call_operand.hbm [shape: f32[16,64], index: 1, kind: input, shape index: {}]
  %s2 = inlined_call_operand.hbm [shape: f32[32,512], index: 2, kind: output, shape index: {}]
  %s3 = sld [smem:[#allocation0]]
  $region26: #{tpu_custom_call.1} parent=0
    _
  %s5 = ssub.s32 1, %s3
  %s6 = scalar_select 0, %s5, %s3
  $region1: #{tpu_custom_call.1} parent=0
    #allocation2 [shape = 'u8[16384]{0}', space=vmem, size = 0x4000, scoped, tag = 'input window, operand 0, single buffered']
    #allocation3 [shape = 's32[1]{0}', space=sflag, size = 0x4, scoped, tag = 'scoped memory for tpu_custom_call.1']
    #allocation4 [shape = 's32[1]{0}', space=sflag, size = 0x4, scoped, tag = 'scoped memory for tpu_custom_call.1']
    #allocation5 [shape = 'u8[8192]{0}', space=vmem, size = 0x2000, scoped, tag = 'input window, operand 1, single buffered']
    #allocation6 [shape = 's32[1]{0}', space=sflag, size = 0x4, scoped, tag = 'scoped memory for tpu_custom_call.1']
    #allocation7 [shape = 'u8[65536]{0}', space=vmem, size = 0x10000, scoped, tag = 'output window, operand 0, single buffered']
    %7 = vsyncpa [#allocation3], 0
    %8 = vsyncpa [#allocation6], 0
    %9 = vsyncpa [#allocation4], 0
    // Predicated region
    $region2: #{tpu_custom_call.1} parent=1 // pred_check
      _
    $region3: #{tpu_custom_call.1} parent=1 // pred_check_branch
      %11 = sbr.rel (0) target = $region5
    $region4: #{tpu_custom_call.1} parent=1 // pred_region
      %s13 = ssub.s32 512, 512
      %14 = vsyncadd [#allocation3], %s13
      %s15 = sshll.u32 [#allocation2], 4
      %s16 = int_to_ptr.vmem [resolvable:$true] %s15
      %21 = dma.hbm_to_vmem [thread:$0]  %s0, 512, %s16, [#allocation3], 128, 128, 8
    $region5: #{tpu_custom_call.1} parent=1 // pred_fallthru
      _
    // Predicated region
    $region6: #{tpu_custom_call.1} parent=1 // pred_check
      _
    $region7: #{tpu_custom_call.1} parent=1 // pred_check_branch
      %23 = sbr.rel (0) target = $region9
    $region8: #{tpu_custom_call.1} parent=1 // pred_region
      %s25 = ssub.s32 256, 256
      %26 = vsyncadd [#allocation6], %s25
      %s27 = sshll.u32 [#allocation5], 4
      %s28 = int_to_ptr.vmem [resolvable:$true] %s27
      %33 = dma.hbm_to_vmem [thread:$0]  %s1, 256, %s28, [#allocation6], 128, 128, 8
    $region9: #{tpu_custom_call.1} parent=1 // pred_fallthru
      _
    // Predicated region
    $region10: #{tpu_custom_call.1} parent=1 // pred_check
      _
    $region11: #{tpu_custom_call.1} parent=1 // pred_check_branch
      %35 = sbr.rel (0) target = $region13
    $region12: #{tpu_custom_call.1} parent=1 // pred_region
      %36 = dma.done [#allocation3], 512
    $region13: #{tpu_custom_call.1} parent=1 // pred_fallthru
      _
    // Predicated region
    $region14: #{tpu_custom_call.1} parent=1 // pred_check
      _
    $region15: #{tpu_custom_call.1} parent=1 // pred_check_branch
      %38 = sbr.rel (0) target = $region17
    $region16: #{tpu_custom_call.1} parent=1 // pred_region
      %39 = dma.done [#allocation6], 256
    $region17: #{tpu_custom_call.1} parent=1 // pred_fallthru
      _
    %v40 = vld [vmem:[#allocation5] sm:$0xff]
    %v41 = vld [vmem:[#allocation5 + $0x8] sm:$0xff]
    %v42 = vld [vmem:[#allocation2] sm:$0xff]
    %v43 = vld [vmem:[#allocation2 + $0x8] sm:$0xff]
    %v44 = vld [vmem:[#allocation2 + $0x10] sm:$0xff]
    %v45 = vld [vmem:[#allocation2 + $0x18] sm:$0xff]
    %vm46 = vcmask 130048
    %v48 = vsel %vm46, %v42, 0
    %v51 = vsel %vm46, %v43, 0
    %v54 = vsel %vm46, %v44, 0
    %v57 = vsel %vm46, %v45, 0
    %59 = vmatprep.subr.mxu0 0.0
    %60 = vmatpush1.msra.mxu0 %v40
    %61 = vmatprep.subr.mxu0 0.0
    %62 = vmatpush1.msra.mxu0 %v41
    %63 = vmatprep.subr.mxu0 0.0
    %64 = vmatpush1.msra.mxu0 0.0
    %65 = vmatprep.subr.mxu0 0.0
    %66 = vmatpush1.msra.mxu0 0.0
    %67 = vmatprep.subr.mxu0 0.0
    %68 = vmatpush1.msra.mxu0 0.0
    %69 = vmatprep.subr.mxu0 0.0
    %70 = vmatpush1.msra.mxu0 0.0
    %71 = vmatprep.subr.mxu0 0.0
    %72 = vmatpush1.msra.mxu0 0.0
    %73 = vmatprep.subr.mxu0 0.0
    %74 = vmatpush1.msra.mxu0 0.0
    %75 = vmatprep.subr.mxu0 0.0
    %76 = vmatpush1.msra.mxu0 0.0
    %77 = vmatprep.subr.mxu0 0.0
    %78 = vmatpush1.msra.mxu0 0.0
    %79 = vmatprep.subr.mxu0 0.0
    %80 = vmatpush1.msra.mxu0 0.0
    %81 = vmatprep.subr.mxu0 0.0
    %82 = vmatpush1.msra.mxu0 0.0
    %83 = vmatprep.subr.mxu0 0.0
    %84 = vmatpush1.msra.mxu0 0.0
    %85 = vmatprep.subr.mxu0 0.0
    %86 = vmatpush1.msra.mxu0 0.0
    %87 = vmatprep.subr.mxu0 0.0
    %88 = vmatpush1.msra.mxu0 0.0
    %89 = vmatprep.subr.mxu0 0.0
    %90 = vmatpush1.msra.mxu0 0.0
    %91 = vmatprep.subr.mxu0 0.0
    %92 = vmatpush1.msra.mxu0 0.0
    %93 = vmatprep.subr.mxu0 0.0
    %94 = vmatpush1.msra.mxu0 0.0
    %95 = vmatprep.subr.mxu0 0.0
    %96 = vmatpush1.msra.mxu0 0.0
    %97 = vmatprep.subr.mxu0 0.0
    %98 = vmatpush1.msra.mxu0 0.0
    %99 = vmatprep.subr.mxu0 0.0
    %100 = vmatpush1.msra.mxu0 0.0
    %101 = vmatprep.subr.mxu0 0.0
    %102 = vmatpush1.msra.mxu0 0.0
    %103 = vmatprep.subr.mxu0 0.0
    %104 = vmatpush1.msra.mxu0 0.0
    %105 = vmatprep.subr.mxu0 0.0
    %106 = vmatpush1.msra.mxu0 0.0
    %107 = vmatprep.subr.mxu0 0.0
    %108 = vmatpush1.msra.mxu0 0.0
    %109 = vmatprep.subr.mxu0 0.0
    %110 = vmatpush1.msra.mxu0 0.0
    %111 = vmatprep.subr.mxu0 0.0
    %112 = vmatpush1.msra.mxu0 0.0
    %113 = vmatprep.subr.mxu0 0.0
    %114 = vmatpush1.msra.mxu0 0.0
    %115 = vmatprep.subr.mxu0 0.0
    %116 = vmatpush1.msra.mxu0 0.0
    %117 = vmatprep.subr.mxu0 0.0
    %118 = vmatpush1.msra.mxu0 0.0
    %119 = vmatprep.subr.mxu0 0.0
    %120 = vmatpush1.msra.mxu0 0.0
    %121 = vmatprep.subr.mxu0 0.0
    %122 = vmatpush1.msra.mxu0 0.0
    %123 = vmatprep.mubr.f32.mxu0 0.0
    %124 = vmatmul.mubr.f32.gmra.mrb[0].mxu0 %v48
    %v125 = vpop.f32.mrb[0].mxu0
    %v126 = vadd.f32 0.0, %v125
    %v127 = vpop.f32.mrb[0].mxu0
    %128 = vmatprep.mubr.f32.mxu0 0.0
    %129 = vmatmul.mubr.f32.gmra.mrb[0].mxu0 %v51
    %v130 = vpop.f32.mrb[0].mxu0
    %v131 = vadd.f32 0.0, %v130
    %v132 = vpop.f32.mrb[0].mxu0
    %133 = vmatprep.mubr.f32.mxu0 0.0
    %134 = vmatmul.mubr.f32.gmra.mrb[0].mxu0 %v54
    %v135 = vpop.f32.mrb[0].mxu0
    %v136 = vadd.f32 0.0, %v135
    %v137 = vpop.f32.mrb[0].mxu0
    %138 = vmatprep.mubr.f32.mxu0 0.0
    %139 = vmatmul.mubr.f32.gmra.mrb[0].mxu0 %v57
    %v140 = vpop.f32.mrb[0].mxu0
    %v141 = vadd.f32 0.0, %v140
    %v142 = vpop.f32.mrb[0].mxu0
    %143 = vdwg.mxu0
    %vm144 = vcmask 523264
    %145 = vst.msk [vmem:[#allocation7] sm:$0xff] %vm144, %v126
    %146 = vst.msk [vmem:[#allocation7 + $0x20] sm:$0xff] %vm144, %v131
    %147 = vst.msk [vmem:[#allocation7 + $0x40] sm:$0xff] %vm144, %v136
    %148 = vst.msk [vmem:[#allocation7 + $0x60] sm:$0xff] %vm144, %v141
    %153 = vrot.lane.b32.xlu0 %v126, 64
    %v154 = vpop.permute.xlu0 %153
    %155 = vrot.lane.b32.xlu0 %v131, 64
    %v156 = vpop.permute.xlu0 %155
    %157 = vrot.lane.b32.xlu0 %v136, 64
    %v158 = vpop.permute.xlu0 %157
    %159 = vrot.lane.b32.xlu0 %v141, 64
    %v160 = vpop.permute.xlu0 %159
    %vm165 = vcmask 1048064
    %166 = vst.msk [vmem:[#allocation7] sm:$0xff] %vm165, %v154
    %167 = vst.msk [vmem:[#allocation7 + $0x20] sm:$0xff] %vm165, %v156
    %168 = vst.msk [vmem:[#allocation7 + $0x40] sm:$0xff] %vm165, %v158
    %169 = vst.msk [vmem:[#allocation7 + $0x60] sm:$0xff] %vm165, %v160
    %v170 = vld [vmem:[#allocation2] sm:$0xff]
    %v171 = vld [vmem:[#allocation2 + $0x8] sm:$0xff]
    %v172 = vld [vmem:[#allocation2 + $0x10] sm:$0xff]
    %v173 = vld [vmem:[#allocation2 + $0x18] sm:$0xff]
    %178 = vrot.lane.b32.xlu0 %v170, 112
    %v179 = vpop.permute.xlu0 %178
    %180 = vrot.lane.b32.xlu0 %v171, 112
    %v181 = vpop.permute.xlu0 %180
    %182 = vrot.lane.b32.xlu0 %v172, 112
    %v183 = vpop.permute.xlu0 %182
    %184 = vrot.lane.b32.xlu0 %v173, 112
    %v185 = vpop.permute.xlu0 %184
    %v186 = vsel %vm46, %v179, 0
    %v188 = vsel %vm46, %v181, 0
    %v190 = vsel %vm46, %v183, 0
    %v192 = vsel %vm46, %v185, 0
    %194 = vmatprep.subr.mxu0 0.0
    %195 = vmatpush1.msra.mxu0 %v40
    %196 = vmatprep.subr.mxu0 0.0
    %197 = vmatpush1.msra.mxu0 %v41
    %198 = vmatprep.subr.mxu0 0.0
    %199 = vmatpush1.msra.mxu0 0.0
    %200 = vmatprep.subr.mxu0 0.0
    %201 = vmatpush1.msra.mxu0 0.0
    %202 = vmatprep.subr.mxu0 0.0
    %203 = vmatpush1.msra.mxu0 0.0
    %204 = vmatprep.subr.mxu0 0.0
    %205 = vmatpush1.msra.mxu0 0.0
    %206 = vmatprep.subr.mxu0 0.0
    %207 = vmatpush1.msra.mxu0 0.0
    %208 = vmatprep.subr.mxu0 0.0
    %209 = vmatpush1.msra.mxu0 0.0
    %210 = vmatprep.subr.mxu0 0.0
    %211 = vmatpush1.msra.mxu0 0.0
    %212 = vmatprep.subr.mxu0 0.0
    %213 = vmatpush1.msra.mxu0 0.0
    %214 = vmatprep.subr.mxu0 0.0
    %215 = vmatpush1.msra.mxu0 0.0
    %216 = vmatprep.subr.mxu0 0.0
    %217 = vmatpush1.msra.mxu0 0.0
    %218 = vmatprep.subr.mxu0 0.0
    %219 = vmatpush1.msra.mxu0 0.0
    %220 = vmatprep.subr.mxu0 0.0
    %221 = vmatpush1.msra.mxu0 0.0
    %222 = vmatprep.subr.mxu0 0.0
    %223 = vmatpush1.msra.mxu0 0.0
    %224 = vmatprep.subr.mxu0 0.0
    %225 = vmatpush1.msra.mxu0 0.0
    %226 = vmatprep.subr.mxu0 0.0
    %227 = vmatpush1.msra.mxu0 0.0
    %228 = vmatprep.subr.mxu0 0.0
    %229 = vmatpush1.msra.mxu0 0.0
    %230 = vmatprep.subr.mxu0 0.0
    %231 = vmatpush1.msra.mxu0 0.0
    %232 = vmatprep.subr.mxu0 0.0
    %233 = vmatpush1.msra.mxu0 0.0
    %234 = vmatprep.subr.mxu0 0.0
    %235 = vmatpush1.msra.mxu0 0.0
    %236 = vmatprep.subr.mxu0 0.0
    %237 = vmatpush1.msra.mxu0 0.0
    %238 = vmatprep.subr.mxu0 0.0
    %239 = vmatpush1.msra.mxu0 0.0
    %240 = vmatprep.subr.mxu0 0.0
    %241 = vmatpush1.msra.mxu0 0.0
    %242 = vmatprep.subr.mxu0 0.0
    %243 = vmatpush1.msra.mxu0 0.0
    %244 = vmatprep.subr.mxu0 0.0
    %245 = vmatpush1.msra.mxu0 0.0
    %246 = vmatprep.subr.mxu0 0.0
    %247 = vmatpush1.msra.mxu0 0.0
    %248 = vmatprep.subr.mxu0 0.0
    %249 = vmatpush1.msra.mxu0 0.0
    %250 = vmatprep.subr.mxu0 0.0
    %251 = vmatpush1.msra.mxu0 0.0
    %252 = vmatprep.subr.mxu0 0.0
    %253 = vmatpush1.msra.mxu0 0.0
    %254 = vmatprep.subr.mxu0 0.0
    %255 = vmatpush1.msra.mxu0 0.0
    %256 = vmatprep.subr.mxu0 0.0
    %257 = vmatpush1.msra.mxu0 0.0
    %258 = vmatprep.mubr.f32.mxu0 0.0
    %259 = vmatmul.mubr.f32.gmra.mrb[0].mxu0 %v186
    %v260 = vpop.f32.mrb[0].mxu0
    %v261 = vadd.f32 0.0, %v260
    %v262 = vpop.f32.mrb[0].mxu0
    %263 = vmatprep.mubr.f32.mxu0 0.0
    %264 = vmatmul.mubr.f32.gmra.mrb[0].mxu0 %v188
    %v265 = vpop.f32.mrb[0].mxu0
    %v266 = vadd.f32 0.0, %v265
    %v267 = vpop.f32.mrb[0].mxu0
    %268 = vmatprep.mubr.f32.mxu0 0.0
    %269 = vmatmul.mubr.f32.gmra.mrb[0].mxu0 %v190
    %v270 = vpop.f32.mrb[0].mxu0
    %v271 = vadd.f32 0.0, %v270
    %v272 = vpop.f32.mrb[0].mxu0
    %273 = vmatprep.mubr.f32.mxu0 0.0
    %274 = vmatmul.mubr.f32.gmra.mrb[0].mxu0 %v192
    %v275 = vpop.f32.mrb[0].mxu0
    %v276 = vadd.f32 0.0, %v275
    %v277 = vpop.f32.mrb[0].mxu0
    %278 = vdwg.mxu0
    %279 = vst.msk [vmem:[#allocation7 + $0x8] sm:$0xff] %vm144, %v261
    %280 = vst.msk [vmem:[#allocation7 + $0x28] sm:$0xff] %vm144, %v266
    %281 = vst.msk [vmem:[#allocation7 + $0x48] sm:$0xff] %vm144, %v271
    %282 = vst.msk [vmem:[#allocation7 + $0x68] sm:$0xff] %vm144, %v276
    %287 = vrot.lane.b32.xlu0 %v261, 64
    %v288 = vpop.permute.xlu0 %287
    %289 = vrot.lane.b32.xlu0 %v266, 64
    %v290 = vpop.permute.xlu0 %289
    %291 = vrot.lane.b32.xlu0 %v271, 64
    %v292 = vpop.permute.xlu0 %291
    %293 = vrot.lane.b32.xlu0 %v276, 64
    %v294 = vpop.permute.xlu0 %293
    %299 = vst.msk [vmem:[#allocation7 + $0x8] sm:$0xff] %vm165, %v288
    %300 = vst.msk [vmem:[#allocation7 + $0x28] sm:$0xff] %vm165, %v290
    %301 = vst.msk [vmem:[#allocation7 + $0x48] sm:$0xff] %vm165, %v292
    %302 = vst.msk [vmem:[#allocation7 + $0x68] sm:$0xff] %vm165, %v294
    %v303 = vld [vmem:[#allocation2] sm:$0xff]
    %v304 = vld [vmem:[#allocation2 + $0x8] sm:$0xff]
    %v305 = vld [vmem:[#allocation2 + $0x10] sm:$0xff]
    %v306 = vld [vmem:[#allocation2 + $0x18] sm:$0xff]
    %311 = vrot.lane.b32.xlu0 %v303, 96
    %v312 = vpop.permute.xlu0 %311
    %313 = vrot.lane.b32.xlu0 %v304, 96
    %v314 = vpop.permute.xlu0 %313
    %315 = vrot.lane.b32.xlu0 %v305, 96
    %v316 = vpop.permute.xlu0 %315
    %317 = vrot.lane.b32.xlu0 %v306, 96
    %v318 = vpop.permute.xlu0 %317
    %v319 = vsel %vm46, %v312, 0
    %v321 = vsel %vm46, %v314, 0
    %v323 = vsel %vm46, %v316, 0
    %v325 = vsel %vm46, %v318, 0
    %327 = vmatprep.subr.mxu0 0.0
    %328 = vmatpush1.msra.mxu0 %v40
    %329 = vmatprep.subr.mxu0 0.0
    %330 = vmatpush1.msra.mxu0 %v41
    %331 = vmatprep.subr.mxu0 0.0
    %332 = vmatpush1.msra.mxu0 0.0
    %333 = vmatprep.subr.mxu0 0.0
    %334 = vmatpush1.msra.mxu0 0.0
    %335 = vmatprep.subr.mxu0 0.0
    %336 = vmatpush1.msra.mxu0 0.0
    %337 = vmatprep.subr.mxu0 0.0
    %338 = vmatpush1.msra.mxu0 0.0
    %339 = vmatprep.subr.mxu0 0.0
    %340 = vmatpush1.msra.mxu0 0.0
    %341 = vmatprep.subr.mxu0 0.0
    %342 = vmatpush1.msra.mxu0 0.0
    %343 = vmatprep.subr.mxu0 0.0
    %344 = vmatpush1.msra.mxu0 0.0
    %345 = vmatprep.subr.mxu0 0.0
    %346 = vmatpush1.msra.mxu0 0.0
    %347 = vmatprep.subr.mxu0 0.0
    %348 = vmatpush1.msra.mxu0 0.0
    %349 = vmatprep.subr.mxu0 0.0
    %350 = vmatpush1.msra.mxu0 0.0
    %351 = vmatprep.subr.mxu0 0.0
    %352 = vmatpush1.msra.mxu0 0.0
    %353 = vmatprep.subr.mxu0 0.0
    %354 = vmatpush1.msra.mxu0 0.0
    %355 = vmatprep.subr.mxu0 0.0
    %356 = vmatpush1.msra.mxu0 0.0
    %357 = vmatprep.subr.mxu0 0.0
    %358 = vmatpush1.msra.mxu0 0.0
    %359 = vmatprep.subr.mxu0 0.0
    %360 = vmatpush1.msra.mxu0 0.0
    %361 = vmatprep.subr.mxu0 0.0
    %362 = vmatpush1.msra.mxu0 0.0
    %363 = vmatprep.subr.mxu0 0.0
    %364 = vmatpush1.msra.mxu0 0.0
    %365 = vmatprep.subr.mxu0 0.0
    %366 = vmatpush1.msra.mxu0 0.0
    %367 = vmatprep.subr.mxu0 0.0
    %368 = vmatpush1.msra.mxu0 0.0
    %369 = vmatprep.subr.mxu0 0.0
    %370 = vmatpush1.msra.mxu0 0.0
    %371 = vmatprep.subr.mxu0 0.0
    %372 = vmatpush1.msra.mxu0 0.0
    %373 = vmatprep.subr.mxu0 0.0
    %374 = vmatpush1.msra.mxu0 0.0
    %375 = vmatprep.subr.mxu0 0.0
    %376 = vmatpush1.msra.mxu0 0.0
    %377 = vmatprep.subr.mxu0 0.0
    %378 = vmatpush1.msra.mxu0 0.0
    %379 = vmatprep.subr.mxu0 0.0
    %380 = vmatpush1.msra.mxu0 0.0
    %381 = vmatprep.subr.mxu0 0.0
    %382 = vmatpush1.msra.mxu0 0.0
    %383 = vmatprep.subr.mxu0 0.0
    %384 = vmatpush1.msra.mxu0 0.0
    %385 = vmatprep.subr.mxu0 0.0
    %386 = vmatpush1.msra.mxu0 0.0
    %387 = vmatprep.subr.mxu0 0.0
    %388 = vmatpush1.msra.mxu0 0.0
    %389 = vmatprep.subr.mxu0 0.0
    %390 = vmatpush1.msra.mxu0 0.0
    %391 = vmatprep.mubr.f32.mxu0 0.0
    %392 = vmatmul.mubr.f32.gmra.mrb[0].mxu0 %v319
    %v393 = vpop.f32.mrb[0].mxu0
    %v394 = vadd.f32 0.0, %v393
    %v395 = vpop.f32.mrb[0].mxu0
    %396 = vmatprep.mubr.f32.mxu0 0.0
    %397 = vmatmul.mubr.f32.gmra.mrb[0].mxu0 %v321
    %v398 = vpop.f32.mrb[0].mxu0
    %v399 = vadd.f32 0.0, %v398
    %v400 = vpop.f32.mrb[0].mxu0
    %401 = vmatprep.mubr.f32.mxu0 0.0
    %402 = vmatmul.mubr.f32.gmra.mrb[0].mxu0 %v323
    %v403 = vpop.f32.mrb[0].mxu0
    %v404 = vadd.f32 0.0, %v403
    %v405 = vpop.f32.mrb[0].mxu0
    %406 = vmatprep.mubr.f32.mxu0 0.0
    %407 = vmatmul.mubr.f32.gmra.mrb[0].mxu0 %v325
    %v408 = vpop.f32.mrb[0].mxu0
    %v409 = vadd.f32 0.0, %v408
    %v410 = vpop.f32.mrb[0].mxu0
    %411 = vdwg.mxu0
    %412 = vst.msk [vmem:[#allocation7 + $0x10] sm:$0xff] %vm144, %v394
    %413 = vst.msk [vmem:[#allocation7 + $0x30] sm:$0xff] %vm144, %v399
    %414 = vst.msk [vmem:[#allocation7 + $0x50] sm:$0xff] %vm144, %v404
    %415 = vst.msk [vmem:[#allocation7 + $0x70] sm:$0xff] %vm144, %v409
    %420 = vrot.lane.b32.xlu0 %v394, 64
    %v421 = vpop.permute.xlu0 %420
    %422 = vrot.lane.b32.xlu0 %v399, 64
    %v423 = vpop.permute.xlu0 %422
    %424 = vrot.lane.b32.xlu0 %v404, 64
    %v425 = vpop.permute.xlu0 %424
    %426 = vrot.lane.b32.xlu0 %v409, 64
    %v427 = vpop.permute.xlu0 %426
    %432 = vst.msk [vmem:[#allocation7 + $0x10] sm:$0xff] %vm165, %v421
    %433 = vst.msk [vmem:[#allocation7 + $0x30] sm:$0xff] %vm165, %v423
    %434 = vst.msk [vmem:[#allocation7 + $0x50] sm:$0xff] %vm165, %v425
    %435 = vst.msk [vmem:[#allocation7 + $0x70] sm:$0xff] %vm165, %v427
    %v436 = vld [vmem:[#allocation2] sm:$0xff]
    %v437 = vld [vmem:[#allocation2 + $0x8] sm:$0xff]
    %v438 = vld [vmem:[#allocation2 + $0x10] sm:$0xff]
    %v439 = vld [vmem:[#allocation2 + $0x18] sm:$0xff]
    %444 = vrot.lane.b32.xlu0 %v436, 80
    %v445 = vpop.permute.xlu0 %444
    %446 = vrot.lane.b32.xlu0 %v437, 80
    %v447 = vpop.permute.xlu0 %446
    %448 = vrot.lane.b32.xlu0 %v438, 80
    %v449 = vpop.permute.xlu0 %448
    %450 = vrot.lane.b32.xlu0 %v439, 80
    %v451 = vpop.permute.xlu0 %450
    %v452 = vsel %vm46, %v445, 0
    %v454 = vsel %vm46, %v447, 0
    %v456 = vsel %vm46, %v449, 0
    %v458 = vsel %vm46, %v451, 0
    %460 = vmatprep.subr.mxu0 0.0
    %461 = vmatpush1.msra.mxu0 %v40
    %462 = vmatprep.subr.mxu0 0.0
    %463 = vmatpush1.msra.mxu0 %v41
    %464 = vmatprep.subr.mxu0 0.0
    %465 = vmatpush1.msra.mxu0 0.0
    %466 = vmatprep.subr.mxu0 0.0
    %467 = vmatpush1.msra.mxu0 0.0
    %468 = vmatprep.subr.mxu0 0.0
    %469 = vmatpush1.msra.mxu0 0.0
    %470 = vmatprep.subr.mxu0 0.0
    %471 = vmatpush1.msra.mxu0 0.0
    %472 = vmatprep.subr.mxu0 0.0
    %473 = vmatpush1.msra.mxu0 0.0
    %474 = vmatprep.subr.mxu0 0.0
    %475 = vmatpush1.msra.mxu0 0.0
    %476 = vmatprep.subr.mxu0 0.0
    %477 = vmatpush1.msra.mxu0 0.0
    %478 = vmatprep.subr.mxu0 0.0
    %479 = vmatpush1.msra.mxu0 0.0
    %480 = vmatprep.subr.mxu0 0.0
    %481 = vmatpush1.msra.mxu0 0.0
    %482 = vmatprep.subr.mxu0 0.0
    %483 = vmatpush1.msra.mxu0 0.0
    %484 = vmatprep.subr.mxu0 0.0
    %485 = vmatpush1.msra.mxu0 0.0
    %486 = vmatprep.subr.mxu0 0.0
    %487 = vmatpush1.msra.mxu0 0.0
    %488 = vmatprep.subr.mxu0 0.0
    %489 = vmatpush1.msra.mxu0 0.0
    %490 = vmatprep.subr.mxu0 0.0
    %491 = vmatpush1.msra.mxu0 0.0
    %492 = vmatprep.subr.mxu0 0.0
    %493 = vmatpush1.msra.mxu0 0.0
    %494 = vmatprep.subr.mxu0 0.0
    %495 = vmatpush1.msra.mxu0 0.0
    %496 = vmatprep.subr.mxu0 0.0
    %497 = vmatpush1.msra.mxu0 0.0
    %498 = vmatprep.subr.mxu0 0.0
    %499 = vmatpush1.msra.mxu0 0.0
    %500 = vmatprep.subr.mxu0 0.0
    %501 = vmatpush1.msra.mxu0 0.0
    %502 = vmatprep.subr.mxu0 0.0
    %503 = vmatpush1.msra.mxu0 0.0
    %504 = vmatprep.subr.mxu0 0.0
    %505 = vmatpush1.msra.mxu0 0.0
    %506 = vmatprep.subr.mxu0 0.0
    %507 = vmatpush1.msra.mxu0 0.0
    %508 = vmatprep.subr.mxu0 0.0
    %509 = vmatpush1.msra.mxu0 0.0
    %510 = vmatprep.subr.mxu0 0.0
    %511 = vmatpush1.msra.mxu0 0.0
    %512 = vmatprep.subr.mxu0 0.0
    %513 = vmatpush1.msra.mxu0 0.0
    %514 = vmatprep.subr.mxu0 0.0
    %515 = vmatpush1.msra.mxu0 0.0
    %516 = vmatprep.subr.mxu0 0.0
    %517 = vmatpush1.msra.mxu0 0.0
    %518 = vmatprep.subr.mxu0 0.0
    %519 = vmatpush1.msra.mxu0 0.0
    %520 = vmatprep.subr.mxu0 0.0
    %521 = vmatpush1.msra.mxu0 0.0
    %522 = vmatprep.subr.mxu0 0.0
    %523 = vmatpush1.msra.mxu0 0.0
    %524 = vmatprep.mubr.f32.mxu0 0.0
    %525 = vmatmul.mubr.f32.gmra.mrb[0].mxu0 %v452
    %v526 = vpop.f32.mrb[0].mxu0
    %v527 = vadd.f32 0.0, %v526
    %v528 = vpop.f32.mrb[0].mxu0
    %529 = vmatprep.mubr.f32.mxu0 0.0
    %530 = vmatmul.mubr.f32.gmra.mrb[0].mxu0 %v454
    %v531 = vpop.f32.mrb[0].mxu0
    %v532 = vadd.f32 0.0, %v531
    %v533 = vpop.f32.mrb[0].mxu0
    %534 = vmatprep.mubr.f32.mxu0 0.0
    %535 = vmatmul.mubr.f32.gmra.mrb[0].mxu0 %v456
    %v536 = vpop.f32.mrb[0].mxu0
    %v537 = vadd.f32 0.0, %v536
    %v538 = vpop.f32.mrb[0].mxu0
    %539 = vmatprep.mubr.f32.mxu0 0.0
    %540 = vmatmul.mubr.f32.gmra.mrb[0].mxu0 %v458
    %v541 = vpop.f32.mrb[0].mxu0
    %v542 = vadd.f32 0.0, %v541
    %v543 = vpop.f32.mrb[0].mxu0
    %544 = vdwg.mxu0
    %545 = vst.msk [vmem:[#allocation7 + $0x18] sm:$0xff] %vm144, %v527
    %546 = vst.msk [vmem:[#allocation7 + $0x38] sm:$0xff] %vm144, %v532
    %547 = vst.msk [vmem:[#allocation7 + $0x58] sm:$0xff] %vm144, %v537
    %548 = vst.msk [vmem:[#allocation7 + $0x78] sm:$0xff] %vm144, %v542
    %553 = vrot.lane.b32.xlu0 %v527, 64
    %v554 = vpop.permute.xlu0 %553
    %555 = vrot.lane.b32.xlu0 %v532, 64
    %v556 = vpop.permute.xlu0 %555
    %557 = vrot.lane.b32.xlu0 %v537, 64
    %v558 = vpop.permute.xlu0 %557
    %559 = vrot.lane.b32.xlu0 %v542, 64
    %v560 = vpop.permute.xlu0 %559
    %565 = vst.msk [vmem:[#allocation7 + $0x18] sm:$0xff] %vm165, %v554
    %566 = vst.msk [vmem:[#allocation7 + $0x38] sm:$0xff] %vm165, %v556
    %567 = vst.msk [vmem:[#allocation7 + $0x58] sm:$0xff] %vm165, %v558
    %568 = vst.msk [vmem:[#allocation7 + $0x78] sm:$0xff] %vm165, %v560
    // Predicated region
    $region18: #{tpu_custom_call.1} parent=1 // pred_check
      _
    $region19: #{tpu_custom_call.1} parent=1 // pred_check_branch
      %570 = sbr.rel (0) target = $region21
    $region20: #{tpu_custom_call.1} parent=1 // pred_region
      %s572 = ssub.s32 2048, 2048
      %573 = vsyncadd [#allocation4], %s572
      %s574 = sshll.u32 [#allocation7], 4
      %s575 = int_to_ptr.vmem [resolvable:$true] %s574
      %580 = dma.vmem_to_hbm [thread:$0]  %s575, 2048, %s2, [#allocation4], 512, 512, 32
    $region21: #{tpu_custom_call.1} parent=1 // pred_fallthru
      _
    // Predicated region
    $region22: #{tpu_custom_call.1} parent=1 // pred_check
      _
    $region23: #{tpu_custom_call.1} parent=1 // pred_check_branch
      %582 = sbr.rel (0) target = $region25
    $region24: #{tpu_custom_call.1} parent=1 // pred_region
      %583 = dma.done [#allocation4], 2048
    $region25: #{tpu_custom_call.1} parent=1 // pred_fallthru
      _
    %584 = vsyncpa [#allocation3], 1
    %585 = vsyncpa [#allocation6], 1
    %586 = vsyncpa [#allocation4], 1

</llo_original>
